<compile_context>
chip_gen: v5e
topology: v5e:2x2
jax: 0.10.0
libtpu: 0.0.40
codegen_flags: <defaults>
</compile_context>

<pallas_src>
import functools

import jax
import jax.numpy as jnp
from jax.experimental import pallas as pl
from jax.experimental.pallas import tpu as pltpu


def _round_up(n, m):
    return -(-n // m) * m


def _cdiv(a, b):
    return -(-a // b)


def _snake_kernel(x_ref, ab_ref, o_ref, *, compute_dtype):
    # x_ref: (1, Ct, St, 128) or (1, Ct, Tt); ab_ref: (2, Ct, 1[, 1]) f32.
    x = x_ref[...].astype(compute_dtype)
    ab = ab_ref[...].astype(compute_dtype)
    a = ab[0]        # (Ct, 1[, 1]) -> broadcasts over time (sublanes/lanes)
    inv_a = ab[1]    # exact 1/(alpha + 1e-9), precomputed once in the wrapper
    s = jnp.sin(a * x)
    o_ref[...] = (x + inv_a * (s * s)).astype(o_ref.dtype)


def snake1d(x, alpha, *, target_block_bytes=4 << 20,
            compute_dtype=jnp.float32):
    """Snake1d forward: y = x + (alpha + 1e-9)^-1 * sin(alpha * x)^2.

    Args:
      x:     (B, C, T) or (B, T) float array.
      alpha: (1, C, 1) float array (C == 1 for 2-D inputs).
    Returns:
      Array with the same shape and dtype as x.
    """
    orig_ndim = x.ndim
    if orig_ndim == 2:
        x = x[:, None, :]
    assert x.ndim == 3, x.shape
    B, C, T = x.shape
    assert alpha.shape == (1, C, 1), (alpha.shape, x.shape)
    out_dtype = x.dtype
    itemsize = jnp.dtype(out_dtype).itemsize
    n_elems = B * C * T

    # alpha + its exact reciprocal, packed into one tiny (2, C, 1) side input.
    alpha_f32 = alpha.astype(jnp.float32)
    ab = jnp.concatenate([alpha_f32, 1.0 / (alpha_f32 + 1e-9)], axis=0)

    elems_budget = max(8 * 128, target_block_bytes // itemsize)

    if T % 128 == 0:
        # ---- layout A: sublanes come from time, no channel padding --------
        S = T // 128
        x_in = x.reshape(B, C, S, 128)           # free, layout-preserving
        ab_in = ab.reshape(2, C, 1, 1)

        if C * 8 * 128 <= elems_budget:
            c_tile = C
            s_tile = max(8, (elems_budget // (C * 128)) // 8 * 8)
        else:
            s_tile = 8
            c_tile = max(1, elems_budget // (8 * 128))
        c_tile = min(c_tile, C)
        if s_tile >= S:
            s_tile = S                            # equal-full-dim block
        cb, sb = _cdiv(C, c_tile), _cdiv(S, s_tile)

        # Guarantee >= 2 grid tiles so both v7x TensorCores get work.
        if B * cb * sb < 2:
            if S > 8:
                s_tile = _round_up(_cdiv(S, 2), 8)
                sb = _cdiv(S, s_tile)
            elif C > 1:
                c_tile = _cdiv(C, 2)
                cb = _cdiv(C, c_tile)

        grid = (B, cb, sb)
        x_spec = pl.BlockSpec((1, c_tile, s_tile, 128),
                              lambda b, c, s: (b, c, s, 0))
        ab_spec = pl.BlockSpec((2, c_tile, 1, 1),
                               lambda b, c, s: (0, c, 0, 0))
        out_shape = jax.ShapeDtypeStruct((B, C, S, 128), out_dtype)
        block_bytes = c_tile * s_tile * 128 * itemsize
    else:
        # ---- layout B: (B, C, T) tiles, channels on sublanes --------------
        x_in = x
        ab_in = ab
        if C * 128 <= elems_budget:
            c_tile = C
            t_tile = max(128, (elems_budget // C) // 128 * 128)
        else:
            t_tile = 128
            c_tile = max(8, (elems_budget // 128) // 8 * 8)
            if c_tile >= C:
                c_tile = C
        if t_tile >= T:
            t_tile = T                            # equal-full-dim block
        cb, tb = _cdiv(C, c_tile), _cdiv(T, t_tile)

        if B * cb * tb < 2:
            if T > 128:
                t_tile = _round_up(_cdiv(T, 2), 128)
                tb = _cdiv(T, t_tile)
            elif C > 8:
                c_tile = 8
                cb = _cdiv(C, c_tile)

        grid = (B, cb, tb)
        x_spec = pl.BlockSpec((1, c_tile, t_tile),
                              lambda b, c, t: (b, c, t))
        ab_spec = pl.BlockSpec((2, c_tile, 1),
                               lambda b, c, t: (0, c, 0))
        out_shape = jax.ShapeDtypeStruct((B, C, T), out_dtype)
        block_bytes = c_tile * t_tile * itemsize

    # 2x(in) + 2x(out) double-buffered blocks + temporaries; leave headroom
    # under v7x's 64 MiB/TC physical VMEM (v5e default scoped limit is 16 MiB,
    # so the explicit override is still required there).
    vmem_limit = int(min(48 << 20, max(32 << 20, 8 * block_bytes)))

    y = pl.pallas_call(
        functools.partial(_snake_kernel, compute_dtype=compute_dtype),
        out_shape=out_shape,
        grid=grid,
        in_specs=[x_spec, ab_spec],
        out_specs=x_spec,
        compiler_params=pltpu.CompilerParams(
            dimension_semantics=("parallel",) * len(grid),
            vmem_limit_bytes=vmem_limit,
        ),
        cost_estimate=pl.CostEstimate(
            flops=5 * n_elems,
            transcendentals=n_elems,
            bytes_accessed=2 * n_elems * itemsize + 8 * C,
        ),
    )(x_in, ab_in)

    y = y.reshape(B, C, T)
    if orig_ndim == 2:
        y = y[:, 0, :]
    return y


def _ref_snake(x, alpha):
    orig_ndim = x.ndim
    if orig_ndim == 2:
        x = x[:, None, :]
    y = x + (1.0 / (alpha + 1e-9)) * jnp.sin(alpha * x) ** 2
    if orig_ndim == 2:
        y = y[:, 0, :]
    return y


if __name__ == "__main__":
    key = jax.random.PRNGKey(0)
    k0, k1, k2, k3 = jax.random.split(key, 4)

    # Snake1d.__init__ sets alpha = ones(1, C, 1); also exercise non-unit alpha.
    cases = [
        (k0, (2, 4, 16), jnp.ones((1, 4, 1), jnp.float32)),        # spec shape
        (k1, (1, 6, 256), jax.random.uniform(k1, (1, 6, 1)) + 0.5),  # T%128==0
        (k2, (1, 4, 300), jax.random.uniform(k2, (1, 4, 1)) + 0.5),  # ragged T
        (k3, (3, 40), jnp.ones((1, 1, 1), jnp.float32)),            # 2-D input
    ]

    for kk, shape, alpha in cases:
        x = jax.random.normal(kk, shape, dtype=jnp.float32)
        y = snake1d(x, alpha)
        jax.block_until_ready(y)
        y_ref = _ref_snake(x, alpha)
        assert y.shape == x.shape and y.dtype == x.dtype, shape
        assert jnp.allclose(y, y_ref, atol=1e-5, rtol=1e-5), shape

    print("KERNEL_OK")
</pallas_src>

<mosaic_0001>
module attributes {stable_mosaic.version = 11 : i64} {
  func.func @_snake_kernel(%arg0: i32, %arg1: i32, %arg2: i32, %arg3: memref<1x4x16xf32, #tpu.memory_space<vmem>>, %arg4: memref<2x4x1xf32, #tpu.memory_space<vmem>>, %arg5: memref<1x4x16xf32, #tpu.memory_space<vmem>>) attributes {dimension_semantics = [#tpu.dimension_semantics<parallel>, #tpu.dimension_semantics<parallel>, #tpu.dimension_semantics<parallel>], iteration_bounds = array<i64: 2, 1, 1>, scalar_prefetch = 0 : i64, scratch_operands = 0 : i64, tpu.core_type = #tpu.core_type<tc>, window_params = [{transform_indices = @transform_0, window_bounds = array<i64: 1, 4, 16>}, {transform_indices = @transform_1, window_bounds = array<i64: 2, 4, 1>}, {transform_indices = @transform_2, window_bounds = array<i64: 1, 4, 16>}]} {
    %c0 = arith.constant 0 : index
    %c0_0 = arith.constant 0 : index
    %c0_1 = arith.constant 0 : index
    %0 = vector.load %arg3[%c0, %c0_0, %c0_1] : memref<1x4x16xf32, #tpu.memory_space<vmem>>, vector<1x4x16xf32>
    %c0_2 = arith.constant 0 : index
    %c0_3 = arith.constant 0 : index
    %c0_4 = arith.constant 0 : index
    %1 = vector.load %arg4[%c0_2, %c0_3, %c0_4] : memref<2x4x1xf32, #tpu.memory_space<vmem>>, vector<2x4x1xf32>
    %2 = vector.extract_strided_slice %1 {offsets = [0, 0, 0], sizes = [1, 4, 1], strides = [1, 1, 1]} : vector<2x4x1xf32> to vector<1x4x1xf32>
    %3 = vector.shape_cast %2 : vector<1x4x1xf32> to vector<4x1xf32>
    %4 = vector.extract_strided_slice %1 {offsets = [1, 0, 0], sizes = [1, 4, 1], strides = [1, 1, 1]} : vector<2x4x1xf32> to vector<1x4x1xf32>
    %5 = vector.shape_cast %4 : vector<1x4x1xf32> to vector<4x1xf32>
    %6 = vector.shape_cast %3 : vector<4x1xf32> to vector<1x4x1xf32>
    %7 = vector.broadcast %6 : vector<1x4x1xf32> to vector<1x4x16xf32>
    %8 = arith.mulf %7, %0 : vector<1x4x16xf32>
    %9 = math.sin %8 : vector<1x4x16xf32>
    %10 = arith.mulf %9, %9 : vector<1x4x16xf32>
    %11 = vector.shape_cast %5 : vector<4x1xf32> to vector<1x4x1xf32>
    %12 = vector.broadcast %11 : vector<1x4x1xf32> to vector<1x4x16xf32>
    %13 = arith.mulf %12, %10 : vector<1x4x16xf32>
    %14 = arith.addf %0, %13 : vector<1x4x16xf32>
    %c0_5 = arith.constant 0 : index
    %c0_6 = arith.constant 0 : index
    %c0_7 = arith.constant 0 : index
    %15 = vector.load %arg5[%c0_5, %c0_6, %c0_7] : memref<1x4x16xf32, #tpu.memory_space<vmem>>, vector<1x4x16xf32>
    tpu.vector_store %arg5[%c0_5, %c0_6, %c0_7], %14 {strides = array<i32>} : memref<1x4x16xf32, #tpu.memory_space<vmem>>, vector<1x4x16xf32>,
    return
  }
  func.func @transform_0(%arg0: i32, %arg1: i32, %arg2: i32) -> (i32, i32, i32) {
    %c0_i32 = arith.constant 0 : i32
    return %arg0, %arg1, %arg2 : i32, i32, i32
  }
  func.func @transform_1(%arg0: i32, %arg1: i32, %arg2: i32) -> (i32, i32, i32) {
    %c0_i32 = arith.constant 0 : i32
    %c0_i32_0 = arith.constant 0 : i32
    %c0_i32_1 = arith.constant 0 : i32
    return %c0_i32, %arg1, %c0_i32_0 : i32, i32, i32
  }
  func.func @transform_2(%arg0: i32, %arg1: i32, %arg2: i32) -> (i32, i32, i32) {
    %c0_i32 = arith.constant 0 : i32
    return %arg0, %arg1, %arg2 : i32, i32, i32
  }
}

</mosaic_0001>

<llo_original>
// kernel: tpu_custom_call.1
$region0: #{tpu_custom_call.1}
  #allocation0 [shape = 'u32[]', space=smem, size = 0x4, offset = 0x4, fixed_abs, tag = 'smem constant byte address 0x4 - core index']
  #allocation1 [shape = 'u32[72,128]{1,0:T(1,128)}', space=vmem, size = 0x9000, scoped, tag = 'internal scratch']
  %s0 = inlined_call_operand.vmem [shape: f32[2,4,16], index: 0, kind: input, shape index: {}]
  %s1 = inlined_call_operand.vmem [shape: f32[2,4,1], index: 1, kind: input, shape index: {}]
  %s2 = inlined_call_operand.hbm [shape: f32[2,4,16], index: 2, kind: output, shape index: {}]
  %s3 = sld [smem:[#allocation0]]
  $region41: #{tpu_custom_call.1} parent=0
    _
  %s5 = ssub.s32 1, %s3
  %s6 = scalar_select 0, %s5, %s3
  $region1: #{tpu_custom_call.1} parent=0
    #allocation2 [shape = 'u8[4096]{0}', space=vmem, size = 0x1000, scoped, tag = 'output window, operand 0']
    #allocation3 [shape = 's32[2]{0}', space=sflag, size = 0x8, scoped, tag = 'scoped memory for tpu_custom_call.1']
    %7 = vsyncpa [#allocation3], 0
    %s8 = scalar_lea.sflag [#allocation3], 1
    %9 = vsyncpa %s8, 0
    loop: start=0, step=1, limit=4
    $region2: #{tpu_custom_call.1} parent=1 // loop_pre_header
      _
    $region3: #{tpu_custom_call.1} parent=1 // loop_header
      %s11 = sphi 0, %s15
      %p12 = scmp.ge.s32.totalorder %s11, 4
      %s18 = sphi 0, %s37
      %s19 = sphi 0, %s33
      %s20 = sphi 0, %s29
      %s21 = sphi 0, %s18
      %s22 = sphi 0, %s19
      %s23 = sphi 0, %s20
      %s24 = sphi 0, %s21
      %s25 = sphi 0, %s22
      %s26 = sphi 0, %s23
      %s44 = sphi 0, %s46
      %s47 = sphi 0, %s44
      %s48 = sphi 0, %s47
      %s64 = sphi 0, %s48
      %s70 = sphi 0, %s72
      %s73 = sphi 0, %s70
      %s74 = sphi 0, %s73
      %s90 = sphi 0, %s74
      %s100 = sphi 0, %s102
      %s103 = sphi 0, %s100
      %s104 = sphi 0, %s103
      %s120 = sphi 0, %s104
    $region4: #{tpu_custom_call.1} parent=1 // loop_header_branch
      %14 = sbr.rel (%p12) target = $region8
    $region5: #{tpu_custom_call.1} parent=1 // loop_body
      %s16 = ssub.s32 %s11, 1
      %s17 = ssub.s32 %s11, 2
      %s27 = sadd.s32 1, %s20
      %p28 = scmp.ge.s32.totalorder %s27, 1
      %s29 = scalar_select %p28, 0, %s27
      %s30 = sadd.s32 1, %s19
      %s31 = scalar_select %p28, %s30, %s19
      %p32 = scmp.ge.s32.totalorder %s31, 1
      %s33 = scalar_select %p32, 0, %s31
      %s34 = sadd.s32 1, %s18
      %s35 = scalar_select %p32, %s34, %s18
      %p36 = scmp.ge.s32.totalorder %s35, 2
      %s37 = scalar_select %p36, 0, %s35
      %s38 = ssub.s32 %s18, %s37
      %s39 = ssub.s32 %s19, %s33
      %s40 = sor.u32 %s38, %s39
      %s41 = ssub.s32 %s20, %s29
      %s42 = sor.u32 %s40, %s41
      %p43 = scmp.eq.s32.totalorder %s42, 0
      %s45 = sadd.s32 %s44, 1
      %s46 = scalar_select %p43, %s44, %s45
      %p49 = pneg %p43
      %p50 = scmp.eq.s32.totalorder %s11, 1
      %p51 = por %p49, %p50
      %p52 = scmp.ne.s32.totalorder %s44, %s47
      %p53 = scmp.eq.s32.totalorder %s11, 0
      %p54 = por %p52, %p53
      %p55 = scmp.ne.s32.totalorder %s44, %s47
      %p56 = scmp.eq.s32.totalorder %s16, 1
      %p57 = por %p55, %p56
      %p58 = scmp.ne.s32.totalorder %s47, %s48
      %p59 = scmp.eq.s32.totalorder %s16, 0
      %p60 = por %p58, %p59
      %p61 = scmp.ne.s32.totalorder %s47, %s48
      %p62 = scmp.eq.s32.totalorder %s17, 1
      %p63 = por %p61, %p62
      %p65 = scmp.ne.s32.totalorder %s48, %s64
      %p66 = scmp.eq.s32.totalorder %s17, 0
      %p67 = por %p65, %p66
      %s68 = ssub.s32 %s19, %s33
      %p69 = scmp.eq.s32.totalorder %s68, 0
      %s71 = sadd.s32 %s70, 1
      %s72 = scalar_select %p69, %s70, %s71
      %p75 = pneg %p69
      %p76 = scmp.eq.s32.totalorder %s11, 1
      %p77 = por %p75, %p76
      %p78 = scmp.ne.s32.totalorder %s70, %s73
      %p79 = scmp.eq.s32.totalorder %s11, 0
      %p80 = por %p78, %p79
      %p81 = scmp.ne.s32.totalorder %s70, %s73
      %p82 = scmp.eq.s32.totalorder %s16, 1
      %p83 = por %p81, %p82
      %p84 = scmp.ne.s32.totalorder %s73, %s74
      %p85 = scmp.eq.s32.totalorder %s16, 0
      %p86 = por %p84, %p85
      %p87 = scmp.ne.s32.totalorder %s73, %s74
      %p88 = scmp.eq.s32.totalorder %s17, 1
      %p89 = por %p87, %p88
      %p91 = scmp.ne.s32.totalorder %s74, %s90
      %p92 = scmp.eq.s32.totalorder %s17, 0
      %p93 = por %p91, %p92
      %s94 = ssub.s32 %s18, %s37
      %s95 = ssub.s32 %s19, %s33
      %s96 = sor.u32 %s94, %s95
      %s97 = ssub.s32 %s20, %s29
      %s98 = sor.u32 %s96, %s97
      %p99 = scmp.eq.s32.totalorder %s98, 0
      %s101 = sadd.s32 %s100, 1
      %s102 = scalar_select %p99, %s100, %s101
      %p105 = pneg %p99
      %p106 = scmp.eq.s32.totalorder %s11, 1
      %p107 = por %p105, %p106
      %p108 = scmp.ne.s32.totalorder %s100, %s103
      %p109 = scmp.eq.s32.totalorder %s11, 0
      %p110 = por %p108, %p109
      %p111 = scmp.ne.s32.totalorder %s100, %s103
      %p112 = scmp.eq.s32.totalorder %s16, 1
      %p113 = por %p111, %p112
      %p114 = scmp.ne.s32.totalorder %s103, %s104
      %p115 = scmp.eq.s32.totalorder %s16, 0
      %p116 = por %p114, %p115
      %p117 = scmp.ne.s32.totalorder %s103, %s104
      %p118 = scmp.eq.s32.totalorder %s17, 1
      %p119 = por %p117, %p118
      %p121 = scmp.ne.s32.totalorder %s104, %s120
      %p122 = scmp.eq.s32.totalorder %s17, 0
      %p123 = por %p121, %p122
      %p124 = scmp.le.s32.totalorder 1, %s11
      %p125 = scmp.lt.s32.totalorder %s11, 3
      %p126 = pnand %p124, %p125
      %p127 = pneg %p126
      // Predicated region
      $region9: #{tpu_custom_call.1} parent=5 // pred_check
        _
      $region10: #{tpu_custom_call.1} parent=5 // pred_check_branch
        %129 = sbr.rel (%p126) target = $region12
      $region11: #{tpu_custom_call.1} parent=5 // pred_region
        %s130 = ssub.s32 %s11, 1
        // Predicated region
        $region13: #{tpu_custom_call.1} parent=11 // pred_check
          %p131 = pneg %p86
        $region14: #{tpu_custom_call.1} parent=11 // pred_check_branch
          %133 = sbr.rel (%p131) target = $region16
        $region15: #{tpu_custom_call.1} parent=11 // pred_region
          %p134 = scmp.lt.s32.totalorder %s22, 0
          %s135 = scalar_select %p134, %s22, 0
          %s136 = smul.addr %s135, 4
          %s137 = scalar_lea.vmem %s1, %s136
        $region16: #{tpu_custom_call.1} parent=11 // pred_fallthru
          _
      $region12: #{tpu_custom_call.1} parent=5 // pred_fallthru
        _
      %p138 = scmp.lt.s32.totalorder %s11, 2
      // Predicated region
      $region17: #{tpu_custom_call.1} parent=5 // pred_check
        %p139 = pneg %p138
      $region18: #{tpu_custom_call.1} parent=5 // pred_check_branch
        %141 = sbr.rel (%p139) target = $region20
      $region19: #{tpu_custom_call.1} parent=5 // pred_region
        // Predicated region
        $region21: #{tpu_custom_call.1} parent=19 // pred_check
          %p142 = pneg %p54
        $region22: #{tpu_custom_call.1} parent=19 // pred_check_branch
          %144 = sbr.rel (%p142) target = $region24
        $region23: #{tpu_custom_call.1} parent=19 // pred_region
          %p145 = scmp.lt.s32.totalorder %s18, 1
          %s146 = scalar_select %p145, %s18, 1
          %p147 = scmp.lt.s32.totalorder %s19, 0
          %s148 = scalar_select %p147, %s19, 0
          %p149 = scmp.lt.s32.totalorder %s20, 0
          %s150 = scalar_select %p149, %s20, 0
          %s151 = sadd.s32 %s150, %s148
          %s152 = sadd.s32 %s151, %s146
          %s153 = smul.addr %s152, 4
          %s154 = scalar_lea.vmem %s0, %s153
        $region24: #{tpu_custom_call.1} parent=19 // pred_fallthru
          _
      $region20: #{tpu_custom_call.1} parent=5 // pred_fallthru
        _
      %p155 = scmp.le.s32.totalorder 1, %s11
      %p156 = scmp.lt.s32.totalorder %s11, 3
      %p157 = pnand %p155, %p156
      %p158 = pneg %p157
      // Predicated region
      $region25: #{tpu_custom_call.1} parent=5 // pred_check
        _
      $region26: #{tpu_custom_call.1} parent=5 // pred_check_branch
        %160 = sbr.rel (%p157) target = $region28
      $region27: #{tpu_custom_call.1} parent=5 // pred_region
        %s161 = ssub.s32 %s11, 1
        %p162 = scmp.lt.s32.totalorder %s21, 1
        %s163 = scalar_select %p162, %s21, 1
        %p164 = scmp.lt.s32.totalorder %s22, 0
        %s165 = scalar_select %p164, %s22, 0
        %p166 = scmp.lt.s32.totalorder %s23, 0
        %s167 = scalar_select %p166, %s23, 0
        %s168 = sadd.s32 %s167, %s165
        %s169 = sadd.s32 %s168, %s163
        %s170 = smul.addr %s169, 4
        %s171 = scalar_lea.vmem %s0, %s170
        %p172 = pneg %p60
        %p173 = pneg %p57
        %p174 = scmp.lt.s32.totalorder %s22, 0
        %s175 = scalar_select %p174, %s22, 0
        %s176 = smul.addr %s175, 4
        %s177 = scalar_lea.vmem %s1, %s176
        %p178 = pneg %p86
        %p179 = pneg %p83
        %p180 = pneg %p116
        %p181 = pneg %p113
        %s182 = sand.u32 %s103, 1
        %s183 = scalar_lea.sflag [#allocation3], %s182
        %s184 = sand.u32 %s103, 1
        %s185 = smul.addr %s184, 4
        %s186 = scalar_lea.vmem [#allocation2], %s185
        %p187 = scmp.lt.s32.totalorder %s21, 1
        %s188 = scalar_select %p187, %s21, 1
        %p189 = scmp.lt.s32.totalorder %s22, 0
        %s190 = scalar_select %p189, %s22, 0
        %p191 = scmp.lt.s32.totalorder %s23, 0
        %s192 = scalar_select %p191, %s23, 0
        %s193 = sadd.s32 %s192, %s190
        %s194 = sadd.s32 %s193, %s188
        %s195 = smul.addr %s194, 4
        %s196 = scalar_lea.vmem %s0, %s195
        %p197 = scmp.lt.s32.totalorder %s22, 0
        %s198 = scalar_select %p197, %s22, 0
        %s199 = smul.addr %s198, 4
        %s200 = scalar_lea.vmem %s1, %s199
        %v201 = vld [vmem:[%s196] sm:$0xf]
        %v202 = vld [vmem:[%s200] sm:$0xf]
        %v203 = vld [vmem:[%s200 + $0x4] sm:$0xf]
        %205 = vset.pattern.permute.xlu0 0
        %206 = vperm.xlu0 %205, %v202
        %v207 = vpop.permute.xlu0 %206
        %v209 = vmul.f32 %v207, %v201
        %v210 = vand.u32 2147483647, %v209
        %vm211 = vcmp.le.f32.partialorder %v210, 0.7853982
        %vm212 = vcmp.lt.s32.totalorder %v209, 0
        %v213 = vand.u32 %v209, 2139095040
        %v214 = vshrl.u32 %v213, 23
        %v215 = vsub.s32 %v214, 127
        %v216 = vand.u32 2147483647, %v209
        %v217 = vand.u32 %v216, 8388607
        %v218 = vor.u32 %v217, 8388608
        %v219 = vsub.s32 0, %v218
        %v220 = vadd.s32 %v215, 1
        %vm221 = vcmp.gt.s32.totalorder %v220, 0
        %v222 = vsel %vm221, %v220, 0
        %v223 = vshrl.u32 %v222, 5
        %v224 = vand.u32 %v222, 31
        %v225 = vsub.s32 32, %v224
        %v226 = vshrl.u32 683565275, %v225
        %v227 = vshll.u32 683565275, %v224
        %v228 = vshrl.u32 2475754826, %v225
        %v229 = vor.u32 %v227, %v228
        %v230 = vshll.u32 2475754826, %v224
        %v231 = vshrl.u32 2131351028, %v225
        %v232 = vor.u32 %v230, %v231
        %v233 = vshll.u32 2131351028, %v224
        %v234 = vshrl.u32 2102212464, %v225
        %v235 = vor.u32 %v233, %v234
        %v236 = vshll.u32 2102212464, %v224
        %v237 = vshrl.u32 920167782, %v225
        %v238 = vor.u32 %v236, %v237
        %v239 = vshll.u32 920167782, %v224
        %v240 = vshrl.u32 1326507024, %v225
        %v241 = vor.u32 %v239, %v240
        %vm242 = vcmp.lt.s32.totalorder %v223, 1
        %vm243 = vcmp.lt.s32.totalorder %v223, 2
        %vm244 = vcmp.lt.s32.totalorder %v223, 3
        %vm245 = vcmp.lt.s32.totalorder %v223, 4
        %v246 = vsel %vm242, %v226, %v229
        %v247 = vsel %vm245, %v235, 2102212464
        %v248 = vsel %vm244, %v232, %v247
        %v249 = vsel %vm243, %v246, %v248
        %v250 = vsel %vm242, %v229, %v232
        %v251 = vsel %vm245, %v238, 920167782
        %v252 = vsel %vm244, %v235, %v251
        %v253 = vsel %vm243, %v250, %v252
        %v254 = vsel %vm242, %v232, %v235
        %v255 = vsel %vm245, %v241, 1326507024
        %v256 = vsel %vm244, %v238, %v255
        %v257 = vsel %vm243, %v254, %v256
        %v258 = vshll.u32 %v218, 8
        %v259 = vand.u32 %v258, 65535
        %v260 = vshrl.u32 %v258, 16
        %v261 = vand.u32 %v257, 65535
        %v262 = vshrl.u32 %v257, 16
        %v263 = vmul.u32 %v259, %v261
        %v264 = vmul.u32 %v259, %v262
        %v265 = vmul.u32 %v260, %v261
        %v266 = vmul.u32 %v260, %v262
        %v267 = vshll.u32 %v264, 16
        %v268 = vshrl.u32 %v264, 16
        %v269 = vshll.u32 %v265, 16
        %v270 = vshrl.u32 %v265, 16
        %vm271 = vc.u32 %v263, %v267
        %v272 = vsel %vm271, 1, 0
        %v273 = vadd.s32 %v263, %v267
        %v274 = vadd.s32 %v266, %v272
        %vm275 = vc.u32 %v273, %v269
        %v276 = vsel %vm275, 1, 0
        %v277 = vadd.s32 %v273, %v269
        %v278 = vadd.s32 %v274, %v276
        %v279 = vadd.s32 %v278, %v268
        %v280 = vadd.s32 %v279, %v270
        %v281 = vand.u32 %v258, 65535
        %v282 = vshrl.u32 %v258, 16
        %v283 = vand.u32 %v253, 65535
        %v284 = vshrl.u32 %v253, 16
        %v285 = vmul.u32 %v281, %v283
        %v286 = vmul.u32 %v281, %v284
        %v287 = vmul.u32 %v282, %v283
        %v288 = vmul.u32 %v282, %v284
        %v289 = vshll.u32 %v286, 16
        %v290 = vshrl.u32 %v286, 16
        %v291 = vshll.u32 %v287, 16
        %v292 = vshrl.u32 %v287, 16
        %vm293 = vc.u32 %v285, %v289
        %v294 = vsel %vm293, 1, 0
        %v295 = vadd.s32 %v285, %v289
        %v296 = vadd.s32 %v288, %v294
        %vm297 = vc.u32 %v295, %v291
        %v298 = vsel %vm297, 1, 0
        %v299 = vadd.s32 %v295, %v291
        %v300 = vadd.s32 %v296, %v298
        %v301 = vadd.s32 %v300, %v290
        %v302 = vadd.s32 %v301, %v292
        %v303 = vmul.u32 %v258, %v249
        %v304 = vadd.s32 %v280, %v299
        %vm305 = vc.u32 %v280, %v299
        %v306 = vadd.s32 %v302, 1
        %v307 = vsel %vm305, %v306, %v302
        %v308 = vadd.s32 %v303, %v307
        %v309 = vadd.s32 %v308, 536870912
        %v310 = vshrl.u32 %v309, 30
        %v311 = vshll.u32 %v310, 30
        %v312 = vsub.s32 %v308, %v311
        %vm313 = vcmp.lt.s32.totalorder %v312, 0
        %v314 = vsub.s32 0, %v312
        %v315 = vsel %vm313, %v314, %v312
        %v316 = vclz %v315
        %v317 = vsub.s32 %v316, 2
        %vm318 = vcmp.gt.s32.totalorder 0, %v317
        %v319 = vsel %vm318, 0, %v317
        %v320 = vsub.s32 32, %v319
        %v321 = vshll.u32 %v312, %v319
        %v322 = vshrl.u32 %v304, %v320
        %v323 = vor.u32 %v321, %v322
        %v324 = vsub.s32 4294967266, %v319
        %v325 = vadd.s32 %v324, 127
        %v326 = vshll.u32 %v325, 23
        %v327 = vor.u32 4788187, %v326
        %v328 = vand.u32 2147483647, %v327
        %v330 = vcvt.s32.f32 %v323
        %v331 = vmul.f32 %v330, %v328
        %v332 = vxor.u32 %v331, 2147483648
        %v333 = vsel %vm212, %v332, %v331
        %v334 = vsub.s32 4, %v310
        %v335 = vsel %vm212, %v334, %v310
        %v336 = vsel %vm211, %v209, %v333
        %v337 = vsel %vm211, 0, %v335
        %v338 = vmul.f32 %v336, %v336
        %v339 = vmul.f32 %v338, -0.001358992
        %v340 = vadd.f32 %v339, 0.041655596
        %v341 = vmul.f32 %v338, %v340
        %v342 = vadd.f32 %v341, -0.4999988
        %v343 = vmul.f32 %v338, %v342
        %v344 = vadd.f32 1.0, %v343
        %v345 = vmul.f32 %v336, %v336
        %v346 = vmul.f32 %v345, -0.00019511016
        %v347 = vadd.f32 %v346, 0.008332121
        %v348 = vmul.f32 %v345, %v347
        %v349 = vadd.f32 %v348, -0.16666654
        %v350 = vmul.f32 %v345, %v349
        %v351 = vadd.f32 %v350, 1.0
        %v352 = vmul.f32 %v351, %v336
        %vm353 = vweird.f32 %v209
        %v354 = vadd.s32 %v337, 3
        %v355 = vand.u32 %v354, 3
        %vm356 = vcmp.lt.s32.totalorder %v355, 2
        %vm357 = vcmp.eq.s32.totalorder %v355, 0
        %v358 = vxor.u32 %v352, 2147483648
        %v359 = vsel %vm357, %v344, %v358
        %vm360 = vcmp.eq.s32.totalorder %v355, 2
        %v361 = vxor.u32 %v344, 2147483648
        %v362 = vsel %vm360, %v361, %v352
        %v363 = vsel %vm356, %v359, %v362
        %v364 = vsel %vm353, nan, %v363
        %v365 = vmul.f32 %v364, %v364
        %367 = vset.pattern.permute.xlu0 0
        %368 = vperm.xlu0 %367, %v203
        %v369 = vpop.permute.xlu0 %368
        %v371 = vmul.f32 %v369, %v365
        %v372 = vadd.f32 %v201, %v371
        %vm373 = vcmask 125952
        %374 = vst.msk [vmem:[%s186] sm:$0xf] %vm373, %v372
        %s375 = sand.u32 %s103, 1
        %s376 = scalar_lea.sflag [#allocation3], %s375
        %s377 = sand.u32 %s103, 1
        %s378 = smul.addr %s377, 4
        %s379 = scalar_lea.vmem [#allocation2], %s378
        // Predicated region
        $region29: #{tpu_custom_call.1} parent=27 // pred_check
          %p380 = pneg %p113
        $region30: #{tpu_custom_call.1} parent=27 // pred_check_branch
          %382 = sbr.rel (%p380) target = $region32
        $region31: #{tpu_custom_call.1} parent=27 // pred_region
          %384 = vsyncadd %s376, 0
          %s385 = sadd.s32 %s23, %s22
          %s386 = sadd.s32 %s385, %s21
          %s387 = smul.addr %s386, 4
          %s388 = scalar_lea.hbm %s2, %s387
          %s390 = sshll.u32 %s379, 4
          %s391 = int_to_ptr.vmem [resolvable:$true] %s390
          %s392 = sshll.u32 %s388, 4
          %s393 = int_to_ptr.hbm [resolvable:$true] %s392
          %395 = dma.vmem_to_hbm [thread:$0]  %s391, 64, %s393, %s376
        $region32: #{tpu_custom_call.1} parent=27 // pred_fallthru
          _
      $region28: #{tpu_custom_call.1} parent=5 // pred_fallthru
        _
      %p396 = scmp.le.s32.totalorder 2, %s11
      // Predicated region
      $region33: #{tpu_custom_call.1} parent=5 // pred_check
        %p397 = pneg %p396
      $region34: #{tpu_custom_call.1} parent=5 // pred_check_branch
        %399 = sbr.rel (%p397) target = $region36
      $region35: #{tpu_custom_call.1} parent=5 // pred_region
        %s400 = ssub.s32 %s11, 2
        // Predicated region
        $region37: #{tpu_custom_call.1} parent=35 // pred_check
          %p401 = pneg %p119
        $region38: #{tpu_custom_call.1} parent=35 // pred_check_branch
          %403 = sbr.rel (%p401) target = $region40
        $region39: #{tpu_custom_call.1} parent=35 // pred_region
          %s404 = sand.u32 %s104, 1
          %s405 = scalar_lea.sflag [#allocation3], %s404
          %s406 = sand.u32 %s104, 1
          %s407 = smul.addr %s406, 4
          %s408 = scalar_lea.vmem [#allocation2], %s407
          %410 = dma.done %s405, 64
        $region40: #{tpu_custom_call.1} parent=35 // pred_fallthru
          _
      $region36: #{tpu_custom_call.1} parent=5 // pred_fallthru
        _
    $region6: #{tpu_custom_call.1} parent=1 // loop_footer
      %s15 = sadd.s32 1, %s11
    $region7: #{tpu_custom_call.1} parent=1 // loop_footer_branch
      %10 = sbr.rel target = $region3
    $region8: #{tpu_custom_call.1} parent=1 // loop_exit
      _
    %411 = vsyncpa [#allocation3], 1
    %s412 = scalar_lea.sflag [#allocation3], 1
    %413 = vsyncpa %s412, 1

</llo_original>
